<compile_context>
chip_gen: v5e
topology: v5e:2x2
jax: 0.10.0
libtpu: 0.0.40
codegen_flags: <defaults>
</compile_context>

<pallas_src>
import functools

import jax
import jax.numpy as jnp
from jax.experimental import pallas as pl
from jax.experimental.pallas import tpu as pltpu


def _preemphasis_kernel(seed_ref, x_ref, o_ref, *, coef: float):
    """One (rows, tt) time tile: y = x - coef * x_shifted_right_by_one."""
    x = x_ref[...]                                  # (bt, tt) float32
    c = jnp.asarray(coef, dtype=x.dtype)

    # prev[:, j] = x[:, j-1] for j >= 1 (column 0 wraps; fixed below).
    prev = pltpu.roll(x, shift=1, axis=1)
    o_ref[...] = x - c * prev

    # First column of the tile: previous sample comes from the precomputed
    # per-(row, tile) seed (reflect value / chunk seam / last sample of the
    # previous time tile).  seed_ref block is (1, bt, 1).
    o_ref[:, 0:1] = x[:, 0:1] - c * seed_ref[0]


def preemphasis(x: jax.Array, coef: float = 0.97, *,
                lane_tile: int = 32768,
                target_block_bytes: int = 2 * 1024 * 1024) -> jax.Array:
    """Pre-emphasis FIR filter y[t] = x[t] - coef * x[t-1] (reflect padded).

    x: (B, T) waveform -> (B, T) float32.
    """
    B, T = x.shape
    if T < 2:
        raise ValueError("pre-emphasis needs T >= 2")
    x = x.astype(jnp.float32)

    # ---- repack genuinely small batches so f32 sublanes (8) are filled -----
    if B < 8 and T >= 1024:
        G = 1
        while B * G < 8:
            G *= 2
    else:
        G = 1

    if G == 1:
        rows, row_len = B, T
        xr = x
        head_seed = x[:, 1:2]                                     # reflect
    else:
        chunk = -(-T // G)                                        # ceil(T / G)
        pad = G * chunk - T                                       # <= G - 1
        xp = x if pad == 0 else jnp.pad(x, ((0, 0), (0, pad)))
        rows, row_len = B * G, chunk
        xr = xp.reshape(rows, chunk)
        # first chunk of each batch row: reflect value x[:, 1];
        # later chunks: last sample of the previous chunk (seam).
        seams = xp[:, chunk - 1::chunk][:, :G - 1]                # (B, G-1)
        head_seed = jnp.concatenate([x[:, 1:2], seams], axis=1).reshape(rows, 1)

    # Guarantee a lane dimension >= 128 for degenerate tiny inputs.
    kern_len = row_len
    x_kern = xr
    if kern_len < 128:
        x_kern = jnp.pad(xr, ((0, 0), (0, 128 - kern_len)))
        kern_len = 128

    # ---- time tiling: big lane-dense blocks (~target_block_bytes) ----------
    bt = rows                                                     # full row extent
    cap = min(lane_tile, target_block_bytes // (bt * 4), kern_len)
    tt = max(128, (cap // 128) * 128)                             # multiple of 128
    n_tiles = pl.cdiv(kern_len, tt)                               # ragged tail OK

    # Per-(row, time-tile) boundary seeds: previous sample of the tile's
    # first column.  Tile 0 uses the reflect / chunk-seam value.
    if n_tiles > 1:
        interior = x_kern[:, tt - 1::tt][:, :n_tiles - 1]         # (rows, n_tiles-1)
        seed = jnp.concatenate([head_seed, interior], axis=1)     # (rows, n_tiles)
    else:
        seed = head_seed                                          # (rows, 1)
    seed = jnp.transpose(seed)[:, :, None]                        # (n_tiles, rows, 1)

    kernel = functools.partial(_preemphasis_kernel, coef=coef)
    y = pl.pallas_call(
        kernel,
        out_shape=jax.ShapeDtypeStruct((rows, kern_len), jnp.float32),
        grid=(n_tiles,),
        in_specs=[
            pl.BlockSpec((1, bt, 1), lambda ti: (ti, 0, 0)),      # boundary seeds
            pl.BlockSpec((bt, tt), lambda ti: (0, ti)),           # waveform tiles
        ],
        out_specs=pl.BlockSpec((bt, tt), lambda ti: (0, ti)),
        compiler_params=pltpu.CompilerParams(
            dimension_semantics=("parallel",),
            vmem_limit_bytes=32 * 1024 * 1024,
        ),
    )(seed, x_kern)

    if G == 1:
        return y if kern_len == T else y[:, :T]
    y = y.reshape(B, G * row_len)
    return y if G * row_len == T else y[:, :T]


if __name__ == "__main__":
    coef = 0.97                     # same as the PyTorch registered buffer
    key = jax.random.PRNGKey(0)

    def reference(x):
        # torch reflect-pad by 1 + conv1d with filter [-coef, 1.0]
        x_prev = jnp.concatenate([x[:, 1:2], x[:, :-1]], axis=1)
        return x - coef * x_prev

    # Small deterministic (batch, num_samples) waveforms covering the
    # repacked-small-batch path, the no-repack path, and odd/ragged shapes.
    cases = [(2, 16000), (8, 1920), (3, 700)]
    for i, (B, T) in enumerate(cases):
        k = jax.random.fold_in(key, i)
        x = jax.random.normal(k, (B, T), dtype=jnp.float32)

        y = jax.block_until_ready(preemphasis(x, coef=coef))
        y_ref = reference(x)

        assert y.shape == (B, T) and y.dtype == jnp.float32
        err = float(jnp.max(jnp.abs(y - y_ref)))
        assert err < 1e-6, (B, T, err)

    print("KERNEL_OK")
</pallas_src>

<mosaic_0001>
module attributes {stable_mosaic.version = 11 : i64} {
  func.func @_preemphasis_kernel(%arg0: i32, %arg1: memref<1x8x1xf32, #tpu.memory_space<vmem>>, %arg2: memref<8x3968xf32, #tpu.memory_space<vmem>>, %arg3: memref<8x3968xf32, #tpu.memory_space<vmem>>) attributes {dimension_semantics = [#tpu.dimension_semantics<parallel>], iteration_bounds = array<i64: 2>, scalar_prefetch = 0 : i64, scratch_operands = 0 : i64, tpu.core_type = #tpu.core_type<tc>, window_params = [{transform_indices = @transform_0, window_bounds = array<i64: 1, 8, 1>}, {transform_indices = @transform_1, window_bounds = array<i64: 8, 3968>}, {transform_indices = @transform_2, window_bounds = array<i64: 8, 3968>}]} {
    %c0 = arith.constant 0 : index
    %c0_0 = arith.constant 0 : index
    %0 = vector.load %arg2[%c0, %c0_0] : memref<8x3968xf32, #tpu.memory_space<vmem>>, vector<8x3968xf32>
    %c1_i32 = arith.constant 1 : i32
    %1 = tpu.dynamic_rotate %0 by %c1_i32 dim 1 : vector<8x3968xf32>, i32 -> vector<8x3968xf32>
    %cst = arith.constant 9.700000e-01 : f32
    %2 = vector.broadcast %cst : f32 to vector<8x3968xf32>
    %3 = arith.mulf %2, %1 : vector<8x3968xf32>
    %4 = arith.subf %0, %3 : vector<8x3968xf32>
    %c0_1 = arith.constant 0 : index
    %c0_2 = arith.constant 0 : index
    %5 = vector.load %arg3[%c0_1, %c0_2] : memref<8x3968xf32, #tpu.memory_space<vmem>>, vector<8x3968xf32>
    tpu.vector_store %arg3[%c0_1, %c0_2], %4 {strides = array<i32>} : memref<8x3968xf32, #tpu.memory_space<vmem>>, vector<8x3968xf32>,
    %6 = vector.extract_strided_slice %0 {offsets = [0, 0], sizes = [8, 1], strides = [1, 1]} : vector<8x3968xf32> to vector<8x1xf32>
    %c0_3 = arith.constant 0 : index
    %c0_4 = arith.constant 0 : index
    %c0_5 = arith.constant 0 : index
    %7 = vector.load %arg1[%c0_3, %c0_4, %c0_5] : memref<1x8x1xf32, #tpu.memory_space<vmem>>, vector<1x8x1xf32>
    %8 = vector.shape_cast %7 : vector<1x8x1xf32> to vector<8x1xf32>
    %cst_6 = arith.constant 9.700000e-01 : f32
    %9 = vector.broadcast %cst_6 : f32 to vector<8x1xf32>
    %10 = arith.mulf %9, %8 : vector<8x1xf32>
    %11 = arith.subf %6, %10 : vector<8x1xf32>
    %c0_7 = arith.constant 0 : index
    %c0_8 = arith.constant 0 : index
    %12 = vector.load %arg3[%c0_7, %c0_8] : memref<8x3968xf32, #tpu.memory_space<vmem>>, vector<8x1xf32>
    tpu.vector_store %arg3[%c0_7, %c0_8], %11 {strides = array<i32>} : memref<8x3968xf32, #tpu.memory_space<vmem>>, vector<8x1xf32>,
    return
  }
  func.func @transform_0(%arg0: i32) -> (i32, i32, i32) {
    %c0_i32 = arith.constant 0 : i32
    %c0_i32_0 = arith.constant 0 : i32
    %c0_i32_1 = arith.constant 0 : i32
    return %arg0, %c0_i32, %c0_i32_0 : i32, i32, i32
  }
  func.func @transform_1(%arg0: i32) -> (i32, i32) {
    %c0_i32 = arith.constant 0 : i32
    %c0_i32_0 = arith.constant 0 : i32
    return %c0_i32, %arg0 : i32, i32
  }
  func.func @transform_2(%arg0: i32) -> (i32, i32) {
    %c0_i32 = arith.constant 0 : i32
    %c0_i32_0 = arith.constant 0 : i32
    return %c0_i32, %arg0 : i32, i32
  }
}

</mosaic_0001>

<llo_original>
// kernel: tpu_custom_call.1
$region0: #{tpu_custom_call.1}
  #allocation0 [shape = 'u32[]', space=smem, size = 0x4, offset = 0x4, fixed_abs, tag = 'smem constant byte address 0x4 - core index']
  #allocation1 [shape = 'u32[72,128]{1,0:T(1,128)}', space=vmem, size = 0x9000, scoped, tag = 'internal scratch']
  %s0 = inlined_call_operand.vmem [shape: f32[2,8,1], index: 0, kind: input, shape index: {}]
  %s1 = inlined_call_operand.hbm [shape: f32[8,4000], index: 1, kind: input, shape index: {}]
  %s2 = inlined_call_operand.hbm [shape: f32[8,4000], index: 2, kind: output, shape index: {}]
  %s3 = sld [smem:[#allocation0]]
  $region45: #{tpu_custom_call.1} parent=0
    _
  %s5 = ssub.s32 1, %s3
  %s6 = scalar_select 0, %s5, %s3
  $region1: #{tpu_custom_call.1} parent=0
    #allocation2 [shape = 'u8[253952]{0}', space=vmem, size = 0x3e000, scoped, tag = 'input window, operand 1']
    #allocation3 [shape = 's32[2]{0}', space=sflag, size = 0x8, scoped, tag = 'scoped memory for tpu_custom_call.1']
    #allocation4 [shape = 's32[2]{0}', space=sflag, size = 0x8, scoped, tag = 'scoped memory for tpu_custom_call.1']
    #allocation5 [shape = 'u8[253952]{0}', space=vmem, size = 0x3e000, scoped, tag = 'output window, operand 0']
    %7 = vsyncpa [#allocation3], 0
    %s8 = scalar_lea.sflag [#allocation3], 1
    %9 = vsyncpa %s8, 0
    %10 = vsyncpa [#allocation4], 0
    %s11 = scalar_lea.sflag [#allocation4], 1
    %12 = vsyncpa %s11, 0
    loop: start=0, step=1, limit=4
    $region2: #{tpu_custom_call.1} parent=1 // loop_pre_header
      _
    $region3: #{tpu_custom_call.1} parent=1 // loop_header
      %s14 = sphi 0, %s18
      %p15 = scmp.ge.s32.totalorder %s14, 4
      %s24 = sphi 0, %s26
      %s27 = sphi 0, %s24
      %s28 = sphi 0, %s27
      %s44 = sphi 0, %s28
      %s50 = sphi 0, %s52
      %s53 = sphi 0, %s50
      %s54 = sphi 0, %s53
      %s70 = sphi 0, %s54
      %s76 = sphi 0, %s78
      %s79 = sphi 0, %s76
      %s80 = sphi 0, %s79
      %s96 = sphi 0, %s80
    $region4: #{tpu_custom_call.1} parent=1 // loop_header_branch
      %17 = sbr.rel (%p15) target = $region8
    $region5: #{tpu_custom_call.1} parent=1 // loop_body
      %s19 = ssub.s32 %s14, 1
      %s20 = ssub.s32 %s14, 2
      %s21 = sadd.s32 %s14, 1
      %s22 = ssub.s32 %s14, %s21
      %p23 = scmp.eq.s32.totalorder %s22, 0
      %s25 = sadd.s32 %s24, 1
      %s26 = scalar_select %p23, %s24, %s25
      %p29 = pneg %p23
      %p30 = scmp.eq.s32.totalorder %s14, 1
      %p31 = por %p29, %p30
      %p32 = scmp.ne.s32.totalorder %s24, %s27
      %p33 = scmp.eq.s32.totalorder %s14, 0
      %p34 = por %p32, %p33
      %p35 = scmp.ne.s32.totalorder %s24, %s27
      %p36 = scmp.eq.s32.totalorder %s19, 1
      %p37 = por %p35, %p36
      %p38 = scmp.ne.s32.totalorder %s27, %s28
      %p39 = scmp.eq.s32.totalorder %s19, 0
      %p40 = por %p38, %p39
      %p41 = scmp.ne.s32.totalorder %s27, %s28
      %p42 = scmp.eq.s32.totalorder %s20, 1
      %p43 = por %p41, %p42
      %p45 = scmp.ne.s32.totalorder %s28, %s44
      %p46 = scmp.eq.s32.totalorder %s20, 0
      %p47 = por %p45, %p46
      %s48 = ssub.s32 %s14, %s21
      %p49 = scmp.eq.s32.totalorder %s48, 0
      %s51 = sadd.s32 %s50, 1
      %s52 = scalar_select %p49, %s50, %s51
      %p55 = pneg %p49
      %p56 = scmp.eq.s32.totalorder %s14, 1
      %p57 = por %p55, %p56
      %p58 = scmp.ne.s32.totalorder %s50, %s53
      %p59 = scmp.eq.s32.totalorder %s14, 0
      %p60 = por %p58, %p59
      %p61 = scmp.ne.s32.totalorder %s50, %s53
      %p62 = scmp.eq.s32.totalorder %s19, 1
      %p63 = por %p61, %p62
      %p64 = scmp.ne.s32.totalorder %s53, %s54
      %p65 = scmp.eq.s32.totalorder %s19, 0
      %p66 = por %p64, %p65
      %p67 = scmp.ne.s32.totalorder %s53, %s54
      %p68 = scmp.eq.s32.totalorder %s20, 1
      %p69 = por %p67, %p68
      %p71 = scmp.ne.s32.totalorder %s54, %s70
      %p72 = scmp.eq.s32.totalorder %s20, 0
      %p73 = por %p71, %p72
      %s74 = ssub.s32 %s14, %s21
      %p75 = scmp.eq.s32.totalorder %s74, 0
      %s77 = sadd.s32 %s76, 1
      %s78 = scalar_select %p75, %s76, %s77
      %p81 = pneg %p75
      %p82 = scmp.eq.s32.totalorder %s14, 1
      %p83 = por %p81, %p82
      %p84 = scmp.ne.s32.totalorder %s76, %s79
      %p85 = scmp.eq.s32.totalorder %s14, 0
      %p86 = por %p84, %p85
      %p87 = scmp.ne.s32.totalorder %s76, %s79
      %p88 = scmp.eq.s32.totalorder %s19, 1
      %p89 = por %p87, %p88
      %p90 = scmp.ne.s32.totalorder %s79, %s80
      %p91 = scmp.eq.s32.totalorder %s19, 0
      %p92 = por %p90, %p91
      %p93 = scmp.ne.s32.totalorder %s79, %s80
      %p94 = scmp.eq.s32.totalorder %s20, 1
      %p95 = por %p93, %p94
      %p97 = scmp.ne.s32.totalorder %s80, %s96
      %p98 = scmp.eq.s32.totalorder %s20, 0
      %p99 = por %p97, %p98
      %p100 = scmp.le.s32.totalorder 1, %s14
      %p101 = scmp.lt.s32.totalorder %s14, 3
      %p102 = pnand %p100, %p101
      %p103 = pneg %p102
      // Predicated region
      $region9: #{tpu_custom_call.1} parent=5 // pred_check
        _
      $region10: #{tpu_custom_call.1} parent=5 // pred_check_branch
        %105 = sbr.rel (%p102) target = $region12
      $region11: #{tpu_custom_call.1} parent=5 // pred_region
        %s106 = ssub.s32 %s14, 1
      $region12: #{tpu_custom_call.1} parent=5 // pred_fallthru
        _
      %p107 = scmp.lt.s32.totalorder %s14, 2
      // Predicated region
      $region13: #{tpu_custom_call.1} parent=5 // pred_check
        %p108 = pneg %p107
      $region14: #{tpu_custom_call.1} parent=5 // pred_check_branch
        %110 = sbr.rel (%p108) target = $region16
      $region15: #{tpu_custom_call.1} parent=5 // pred_region
        // Predicated region
        $region17: #{tpu_custom_call.1} parent=15 // pred_check
          %p111 = pneg %p34
        $region18: #{tpu_custom_call.1} parent=15 // pred_check_branch
          %113 = sbr.rel (%p111) target = $region20
        $region19: #{tpu_custom_call.1} parent=15 // pred_region
          %p114 = scmp.lt.s32.totalorder %s14, 1
          %s115 = scalar_select %p114, %s14, 1
          %s116 = smul.addr %s115, 8
          %s117 = scalar_lea.vmem %s0, %s116
        $region20: #{tpu_custom_call.1} parent=15 // pred_fallthru
          _
        // Predicated region
        $region21: #{tpu_custom_call.1} parent=15 // pred_check
          %p118 = pneg %p60
        $region22: #{tpu_custom_call.1} parent=15 // pred_check_branch
          %120 = sbr.rel (%p118) target = $region24
        $region23: #{tpu_custom_call.1} parent=15 // pred_region
          %s121 = sand.u32 %s50, 1
          %s122 = scalar_lea.sflag [#allocation3], %s121
          %s123 = sand.u32 %s50, 1
          %s124 = smul.addr %s123, 248
          %s125 = scalar_lea.vmem [#allocation2], %s124
          %s126 = smul.u32 31, %s14
          %s127 = ssub.s32 32, %s126
          %p128 = scmp.lt.s32.totalorder %s127, 31
          %s129 = scalar_select %p128, %s127, 31
          %s130 = smul.u32 8, %s129
          %s131 = ssub.s32 248, %s130
          %s132 = sshll.u32 %s131, 4
          %133 = vsyncadd %s122, %s132
          %p134 = scmp.ne.s32.totalorder 0, %s130
          %s135 = smul.addr %s126, 8
          %s136 = scalar_lea.hbm %s1, %s135
          %s137 = smul.u32 %s129, 8
          %s138 = sshll.u32 %s137, 4
          %s139 = sshll.u32 %s136, 4
          %s140 = int_to_ptr.hbm [resolvable:$true] %s139
          %s141 = sshll.u32 %s125, 4
          %s142 = int_to_ptr.vmem [resolvable:$true] %s141
          %144 = dma.hbm_to_vmem [thread:$0]  (%p134), %s140, %s138, %s142, %s122
        $region24: #{tpu_custom_call.1} parent=15 // pred_fallthru
          _
      $region16: #{tpu_custom_call.1} parent=5 // pred_fallthru
        _
      %p145 = scmp.le.s32.totalorder 1, %s14
      %p146 = scmp.lt.s32.totalorder %s14, 3
      %p147 = pnand %p145, %p146
      %p148 = pneg %p147
      // Predicated region
      $region25: #{tpu_custom_call.1} parent=5 // pred_check
        _
      $region26: #{tpu_custom_call.1} parent=5 // pred_check_branch
        %150 = sbr.rel (%p147) target = $region28
      $region27: #{tpu_custom_call.1} parent=5 // pred_region
        %s151 = ssub.s32 %s14, 1
        %s152 = sand.u32 %s53, 1
        %s153 = scalar_lea.sflag [#allocation3], %s152
        %s154 = sand.u32 %s53, 1
        %s155 = smul.addr %s154, 248
        %s156 = scalar_lea.vmem [#allocation2], %s155
        // Predicated region
        $region29: #{tpu_custom_call.1} parent=27 // pred_check
          %p157 = pneg %p66
        $region30: #{tpu_custom_call.1} parent=27 // pred_check_branch
          %159 = sbr.rel (%p157) target = $region32
        $region31: #{tpu_custom_call.1} parent=27 // pred_region
          %161 = dma.done %s153, 3968
        $region32: #{tpu_custom_call.1} parent=27 // pred_fallthru
          _
        %p162 = scmp.lt.s32.totalorder %s19, 1
        %s163 = scalar_select %p162, %s19, 1
        %s164 = smul.addr %s163, 8
        %s165 = scalar_lea.vmem %s0, %s164
        %p166 = pneg %p40
        %p167 = pneg %p37
        %s168 = sand.u32 %s53, 1
        %s169 = scalar_lea.sflag [#allocation3], %s168
        %s170 = sand.u32 %s53, 1
        %s171 = smul.addr %s170, 248
        %s172 = scalar_lea.vmem [#allocation2], %s171
        %p173 = pneg %p66
        %p174 = pneg %p63
        %p175 = pneg %p92
        %p176 = pneg %p89
        %s177 = sand.u32 %s79, 1
        %s178 = scalar_lea.sflag [#allocation4], %s177
        %s179 = sand.u32 %s79, 1
        %s180 = smul.addr %s179, 248
        %s181 = scalar_lea.vmem [#allocation5], %s180
        %p182 = scmp.lt.s32.totalorder %s19, 1
        %s183 = scalar_select %p182, %s19, 1
        %s184 = smul.addr %s183, 8
        %s185 = scalar_lea.vmem %s0, %s184
        %s186 = smul.u32 31, %s19
        %s187 = ssub.s32 32, %s186
        %p188 = scmp.lt.s32.totalorder %s187, 31
        %s189 = scalar_select %p188, %s187, 31
        %s190 = smul.u32 8, %s189
        %s191 = smul.u32 31, %s19
        %s192 = ssub.s32 32, %s191
        %p193 = scmp.lt.s32.totalorder %s192, 31
        %s194 = scalar_select %p193, %s192, 31
        %s195 = smul.u32 8, %s194
        %v196 = vld [vmem:[%s156] sm:$0xff]
        %v197 = vld [vmem:[%s156 + $0x8] sm:$0xff]
        %v198 = vld [vmem:[%s156 + $0x10] sm:$0xff]
        %v199 = vld [vmem:[%s156 + $0x18] sm:$0xff]
        %v200 = vld [vmem:[%s156 + $0x20] sm:$0xff]
        %v201 = vld [vmem:[%s156 + $0x28] sm:$0xff]
        %v202 = vld [vmem:[%s156 + $0x30] sm:$0xff]
        %v203 = vld [vmem:[%s156 + $0x38] sm:$0xff]
        %v204 = vld [vmem:[%s156 + $0x40] sm:$0xff]
        %v205 = vld [vmem:[%s156 + $0x48] sm:$0xff]
        %v206 = vld [vmem:[%s156 + $0x50] sm:$0xff]
        %v207 = vld [vmem:[%s156 + $0x58] sm:$0xff]
        %v208 = vld [vmem:[%s156 + $0x60] sm:$0xff]
        %v209 = vld [vmem:[%s156 + $0x68] sm:$0xff]
        %v210 = vld [vmem:[%s156 + $0x70] sm:$0xff]
        %v211 = vld [vmem:[%s156 + $0x78] sm:$0xff]
        %v212 = vld [vmem:[%s156 + $0x80] sm:$0xff]
        %v213 = vld [vmem:[%s156 + $0x88] sm:$0xff]
        %v214 = vld [vmem:[%s156 + $0x90] sm:$0xff]
        %v215 = vld [vmem:[%s156 + $0x98] sm:$0xff]
        %v216 = vld [vmem:[%s156 + $0xa0] sm:$0xff]
        %v217 = vld [vmem:[%s156 + $0xa8] sm:$0xff]
        %v218 = vld [vmem:[%s156 + $0xb0] sm:$0xff]
        %v219 = vld [vmem:[%s156 + $0xb8] sm:$0xff]
        %v220 = vld [vmem:[%s156 + $0xc0] sm:$0xff]
        %v221 = vld [vmem:[%s156 + $0xc8] sm:$0xff]
        %v222 = vld [vmem:[%s156 + $0xd0] sm:$0xff]
        %v223 = vld [vmem:[%s156 + $0xd8] sm:$0xff]
        %v224 = vld [vmem:[%s156 + $0xe0] sm:$0xff]
        %v225 = vld [vmem:[%s156 + $0xe8] sm:$0xff]
        %v226 = vld [vmem:[%s156 + $0xf0] sm:$0xff]
        %227 = vrot.lane.b32.xlu0 %v196, 1
        %v228 = vpop.permute.xlu0 %227
        %229 = vrot.lane.b32.xlu0 %v197, 1
        %v230 = vpop.permute.xlu0 %229
        %231 = vrot.lane.b32.xlu0 %v198, 1
        %v232 = vpop.permute.xlu0 %231
        %233 = vrot.lane.b32.xlu0 %v199, 1
        %v234 = vpop.permute.xlu0 %233
        %235 = vrot.lane.b32.xlu0 %v200, 1
        %v236 = vpop.permute.xlu0 %235
        %237 = vrot.lane.b32.xlu0 %v201, 1
        %v238 = vpop.permute.xlu0 %237
        %239 = vrot.lane.b32.xlu0 %v202, 1
        %v240 = vpop.permute.xlu0 %239
        %241 = vrot.lane.b32.xlu0 %v203, 1
        %v242 = vpop.permute.xlu0 %241
        %243 = vrot.lane.b32.xlu0 %v204, 1
        %v244 = vpop.permute.xlu0 %243
        %245 = vrot.lane.b32.xlu0 %v205, 1
        %v246 = vpop.permute.xlu0 %245
        %247 = vrot.lane.b32.xlu0 %v206, 1
        %v248 = vpop.permute.xlu0 %247
        %249 = vrot.lane.b32.xlu0 %v207, 1
        %v250 = vpop.permute.xlu0 %249
        %251 = vrot.lane.b32.xlu0 %v208, 1
        %v252 = vpop.permute.xlu0 %251
        %253 = vrot.lane.b32.xlu0 %v209, 1
        %v254 = vpop.permute.xlu0 %253
        %255 = vrot.lane.b32.xlu0 %v210, 1
        %v256 = vpop.permute.xlu0 %255
        %257 = vrot.lane.b32.xlu0 %v211, 1
        %v258 = vpop.permute.xlu0 %257
        %259 = vrot.lane.b32.xlu0 %v212, 1
        %v260 = vpop.permute.xlu0 %259
        %261 = vrot.lane.b32.xlu0 %v213, 1
        %v262 = vpop.permute.xlu0 %261
        %263 = vrot.lane.b32.xlu0 %v214, 1
        %v264 = vpop.permute.xlu0 %263
        %265 = vrot.lane.b32.xlu0 %v215, 1
        %v266 = vpop.permute.xlu0 %265
        %267 = vrot.lane.b32.xlu0 %v216, 1
        %v268 = vpop.permute.xlu0 %267
        %269 = vrot.lane.b32.xlu0 %v217, 1
        %v270 = vpop.permute.xlu0 %269
        %271 = vrot.lane.b32.xlu0 %v218, 1
        %v272 = vpop.permute.xlu0 %271
        %273 = vrot.lane.b32.xlu0 %v219, 1
        %v274 = vpop.permute.xlu0 %273
        %275 = vrot.lane.b32.xlu0 %v220, 1
        %v276 = vpop.permute.xlu0 %275
        %277 = vrot.lane.b32.xlu0 %v221, 1
        %v278 = vpop.permute.xlu0 %277
        %279 = vrot.lane.b32.xlu0 %v222, 1
        %v280 = vpop.permute.xlu0 %279
        %281 = vrot.lane.b32.xlu0 %v223, 1
        %v282 = vpop.permute.xlu0 %281
        %283 = vrot.lane.b32.xlu0 %v224, 1
        %v284 = vpop.permute.xlu0 %283
        %285 = vrot.lane.b32.xlu0 %v225, 1
        %v286 = vpop.permute.xlu0 %285
        %287 = vrot.lane.b32.xlu0 %v226, 1
        %v288 = vpop.permute.xlu0 %287
        %v289 = vlaneseq
        %v290 = vand.u32 %v289, 127
        %vm291 = vcmp.lt.s32.totalorder %v290, 1
        %v292 = vsel %vm291, %v286, %v288
        %v293 = vsel %vm291, %v284, %v286
        %v294 = vsel %vm291, %v282, %v284
        %v295 = vsel %vm291, %v280, %v282
        %v296 = vsel %vm291, %v278, %v280
        %v297 = vsel %vm291, %v276, %v278
        %v298 = vsel %vm291, %v274, %v276
        %v299 = vsel %vm291, %v272, %v274
        %v300 = vsel %vm291, %v270, %v272
        %v301 = vsel %vm291, %v268, %v270
        %v302 = vsel %vm291, %v266, %v268
        %v303 = vsel %vm291, %v264, %v266
        %v304 = vsel %vm291, %v262, %v264
        %v305 = vsel %vm291, %v260, %v262
        %v306 = vsel %vm291, %v258, %v260
        %v307 = vsel %vm291, %v256, %v258
        %v308 = vsel %vm291, %v254, %v256
        %v309 = vsel %vm291, %v252, %v254
        %v310 = vsel %vm291, %v250, %v252
        %v311 = vsel %vm291, %v248, %v250
        %v312 = vsel %vm291, %v246, %v248
        %v313 = vsel %vm291, %v244, %v246
        %v314 = vsel %vm291, %v242, %v244
        %v315 = vsel %vm291, %v240, %v242
        %v316 = vsel %vm291, %v238, %v240
        %v317 = vsel %vm291, %v236, %v238
        %v318 = vsel %vm291, %v234, %v236
        %v319 = vsel %vm291, %v232, %v234
        %v320 = vsel %vm291, %v230, %v232
        %v321 = vsel %vm291, %v228, %v230
        %v322 = vsel %vm291, %v288, %v228
        %v323 = vmul.f32 %v322, 0.97
        %v324 = vmul.f32 %v321, 0.97
        %v325 = vmul.f32 %v320, 0.97
        %v326 = vmul.f32 %v319, 0.97
        %v327 = vmul.f32 %v318, 0.97
        %v328 = vmul.f32 %v317, 0.97
        %v329 = vmul.f32 %v316, 0.97
        %v330 = vmul.f32 %v315, 0.97
        %v331 = vmul.f32 %v314, 0.97
        %v332 = vmul.f32 %v313, 0.97
        %v333 = vmul.f32 %v312, 0.97
        %v334 = vmul.f32 %v311, 0.97
        %v335 = vmul.f32 %v310, 0.97
        %v336 = vmul.f32 %v309, 0.97
        %v337 = vmul.f32 %v308, 0.97
        %v338 = vmul.f32 %v307, 0.97
        %v339 = vmul.f32 %v306, 0.97
        %v340 = vmul.f32 %v305, 0.97
        %v341 = vmul.f32 %v304, 0.97
        %v342 = vmul.f32 %v303, 0.97
        %v343 = vmul.f32 %v302, 0.97
        %v344 = vmul.f32 %v301, 0.97
        %v345 = vmul.f32 %v300, 0.97
        %v346 = vmul.f32 %v299, 0.97
        %v347 = vmul.f32 %v298, 0.97
        %v348 = vmul.f32 %v297, 0.97
        %v349 = vmul.f32 %v296, 0.97
        %v350 = vmul.f32 %v295, 0.97
        %v351 = vmul.f32 %v294, 0.97
        %v352 = vmul.f32 %v293, 0.97
        %v353 = vmul.f32 %v292, 0.97
        %v354 = vsub.f32 %v196, %v323
        %v355 = vsub.f32 %v197, %v324
        %v356 = vsub.f32 %v198, %v325
        %v357 = vsub.f32 %v199, %v326
        %v358 = vsub.f32 %v200, %v327
        %v359 = vsub.f32 %v201, %v328
        %v360 = vsub.f32 %v202, %v329
        %v361 = vsub.f32 %v203, %v330
        %v362 = vsub.f32 %v204, %v331
        %v363 = vsub.f32 %v205, %v332
        %v364 = vsub.f32 %v206, %v333
        %v365 = vsub.f32 %v207, %v334
        %v366 = vsub.f32 %v208, %v335
        %v367 = vsub.f32 %v209, %v336
        %v368 = vsub.f32 %v210, %v337
        %v369 = vsub.f32 %v211, %v338
        %v370 = vsub.f32 %v212, %v339
        %v371 = vsub.f32 %v213, %v340
        %v372 = vsub.f32 %v214, %v341
        %v373 = vsub.f32 %v215, %v342
        %v374 = vsub.f32 %v216, %v343
        %v375 = vsub.f32 %v217, %v344
        %v376 = vsub.f32 %v218, %v345
        %v377 = vsub.f32 %v219, %v346
        %v378 = vsub.f32 %v220, %v347
        %v379 = vsub.f32 %v221, %v348
        %v380 = vsub.f32 %v222, %v349
        %v381 = vsub.f32 %v223, %v350
        %v382 = vsub.f32 %v224, %v351
        %v383 = vsub.f32 %v225, %v352
        %v384 = vsub.f32 %v226, %v353
        %385 = vst [vmem:[%s181] sm:$0xff] %v354
        %386 = vst [vmem:[%s181 + $0x8] sm:$0xff] %v355
        %387 = vst [vmem:[%s181 + $0x10] sm:$0xff] %v356
        %388 = vst [vmem:[%s181 + $0x18] sm:$0xff] %v357
        %389 = vst [vmem:[%s181 + $0x20] sm:$0xff] %v358
        %390 = vst [vmem:[%s181 + $0x28] sm:$0xff] %v359
        %391 = vst [vmem:[%s181 + $0x30] sm:$0xff] %v360
        %392 = vst [vmem:[%s181 + $0x38] sm:$0xff] %v361
        %393 = vst [vmem:[%s181 + $0x40] sm:$0xff] %v362
        %394 = vst [vmem:[%s181 + $0x48] sm:$0xff] %v363
        %395 = vst [vmem:[%s181 + $0x50] sm:$0xff] %v364
        %396 = vst [vmem:[%s181 + $0x58] sm:$0xff] %v365
        %397 = vst [vmem:[%s181 + $0x60] sm:$0xff] %v366
        %398 = vst [vmem:[%s181 + $0x68] sm:$0xff] %v367
        %399 = vst [vmem:[%s181 + $0x70] sm:$0xff] %v368
        %400 = vst [vmem:[%s181 + $0x78] sm:$0xff] %v369
        %401 = vst [vmem:[%s181 + $0x80] sm:$0xff] %v370
        %402 = vst [vmem:[%s181 + $0x88] sm:$0xff] %v371
        %403 = vst [vmem:[%s181 + $0x90] sm:$0xff] %v372
        %404 = vst [vmem:[%s181 + $0x98] sm:$0xff] %v373
        %405 = vst [vmem:[%s181 + $0xa0] sm:$0xff] %v374
        %406 = vst [vmem:[%s181 + $0xa8] sm:$0xff] %v375
        %407 = vst [vmem:[%s181 + $0xb0] sm:$0xff] %v376
        %408 = vst [vmem:[%s181 + $0xb8] sm:$0xff] %v377
        %409 = vst [vmem:[%s181 + $0xc0] sm:$0xff] %v378
        %410 = vst [vmem:[%s181 + $0xc8] sm:$0xff] %v379
        %411 = vst [vmem:[%s181 + $0xd0] sm:$0xff] %v380
        %412 = vst [vmem:[%s181 + $0xd8] sm:$0xff] %v381
        %413 = vst [vmem:[%s181 + $0xe0] sm:$0xff] %v382
        %414 = vst [vmem:[%s181 + $0xe8] sm:$0xff] %v383
        %415 = vst [vmem:[%s181 + $0xf0] sm:$0xff] %v384
        %v416 = vld [vmem:[%s185] sm:$0xff]
        %v417 = vmul.f32 %v416, 0.97
        %v418 = vsub.f32 %v196, %v417
        %vm419 = vcmask 7168
        %420 = vst.msk [vmem:[%s181] sm:$0xff] %vm419, %v418
        %s421 = sand.u32 %s79, 1
        %s422 = scalar_lea.sflag [#allocation4], %s421
        %s423 = sand.u32 %s79, 1
        %s424 = smul.addr %s423, 248
        %s425 = scalar_lea.vmem [#allocation5], %s424
        // Predicated region
        $region33: #{tpu_custom_call.1} parent=27 // pred_check
          %p426 = pneg %p89
        $region34: #{tpu_custom_call.1} parent=27 // pred_check_branch
          %428 = sbr.rel (%p426) target = $region36
        $region35: #{tpu_custom_call.1} parent=27 // pred_region
          %s429 = smul.u32 31, %s19
          %s430 = ssub.s32 32, %s429
          %p431 = scmp.lt.s32.totalorder %s430, 31
          %s432 = scalar_select %p431, %s430, 31
          %s433 = smul.u32 8, %s432
          %s434 = ssub.s32 248, %s433
          %s435 = sshll.u32 %s434, 4
          %436 = vsyncadd %s422, %s435
          %p437 = scmp.ne.s32.totalorder 0, %s433
          %s438 = smul.addr %s429, 8
          %s439 = scalar_lea.hbm %s2, %s438
          %s440 = smul.u32 %s432, 8
          %s441 = sshll.u32 %s440, 4
          %s442 = sshll.u32 %s425, 4
          %s443 = int_to_ptr.vmem [resolvable:$true] %s442
          %s444 = sshll.u32 %s439, 4
          %s445 = int_to_ptr.hbm [resolvable:$true] %s444
          %447 = dma.vmem_to_hbm [thread:$0]  (%p437), %s443, %s441, %s445, %s422
        $region36: #{tpu_custom_call.1} parent=27 // pred_fallthru
          _
      $region28: #{tpu_custom_call.1} parent=5 // pred_fallthru
        _
      %p448 = scmp.le.s32.totalorder 2, %s14
      // Predicated region
      $region37: #{tpu_custom_call.1} parent=5 // pred_check
        %p449 = pneg %p448
      $region38: #{tpu_custom_call.1} parent=5 // pred_check_branch
        %451 = sbr.rel (%p449) target = $region40
      $region39: #{tpu_custom_call.1} parent=5 // pred_region
        %s452 = ssub.s32 %s14, 2
        // Predicated region
        $region41: #{tpu_custom_call.1} parent=39 // pred_check
          %p453 = pneg %p95
        $region42: #{tpu_custom_call.1} parent=39 // pred_check_branch
          %455 = sbr.rel (%p453) target = $region44
        $region43: #{tpu_custom_call.1} parent=39 // pred_region
          %s456 = sand.u32 %s80, 1
          %s457 = scalar_lea.sflag [#allocation4], %s456
          %s458 = sand.u32 %s80, 1
          %s459 = smul.addr %s458, 248
          %s460 = scalar_lea.vmem [#allocation5], %s459
          %462 = dma.done %s457, 3968
        $region44: #{tpu_custom_call.1} parent=39 // pred_fallthru
          _
      $region40: #{tpu_custom_call.1} parent=5 // pred_fallthru
        _
    $region6: #{tpu_custom_call.1} parent=1 // loop_footer
      %s18 = sadd.s32 1, %s14
    $region7: #{tpu_custom_call.1} parent=1 // loop_footer_branch
      %13 = sbr.rel target = $region3
    $region8: #{tpu_custom_call.1} parent=1 // loop_exit
      _
    %463 = vsyncpa [#allocation3], 1
    %s464 = scalar_lea.sflag [#allocation3], 1
    %465 = vsyncpa %s464, 1
    %466 = vsyncpa [#allocation4], 1
    %s467 = scalar_lea.sflag [#allocation4], 1
    %468 = vsyncpa %s467, 1

</llo_original>
